<compile_context>
chip_gen: v6e
topology: v6e:2x2x1
jax: 0.10.0
libtpu: 0.0.40
codegen_flags: <defaults>
</compile_context>

<pallas_src>
import functools

import jax
import jax.numpy as jnp
from jax.experimental import pallas as pl
from jax.experimental.pallas import tpu as pltpu


def _round_up(x, m):
    return ((x + m - 1) // m) * m


def _cdiv(a, b):
    return -(-a // b)


# ---------------------------------------------------------------------------
# Kernel (one batch tile per grid step)
# ---------------------------------------------------------------------------
def _kv_lstm_kernel(n_layers, H,
                    x_ref, w0_ref, b0_ref,
                    wih_ref, whh_ref, bg_ref,
                    h0_ref, c0_ref,
                    wo_ref, bo_ref,
                    out_ref):
    """Gate columns live at stride H inside a Gp = round_up(4H,128) slab."""
    x_bf = x_ref[...].astype(jnp.bfloat16)

    h = None
    for layer in range(n_layers):          # statically unrolled (small n_layers)
        if layer == 0:
            inp_bf = x_bf                  # embed folded into w0/b0 at pack time
            w_in = w0_ref[...]
            bias = b0_ref[...]
        else:
            inp_bf = h.astype(jnp.bfloat16)
            w_in = wih_ref[layer - 1]
            bias = bg_ref[layer - 1]
        h_prev_bf = h0_ref[layer].astype(jnp.bfloat16)

        gates = (jnp.dot(inp_bf, w_in, preferred_element_type=jnp.float32)
                 + jnp.dot(h_prev_bf, whh_ref[layer],
                           preferred_element_type=jnp.float32)
                 + bias)                                          # (TB, Gp) f32

        i_g = jax.nn.sigmoid(gates[:, 0 * H:1 * H])
        f_g = jax.nn.sigmoid(gates[:, 1 * H:2 * H])
        g_g = jnp.tanh(gates[:, 2 * H:3 * H])
        o_g = jax.nn.sigmoid(gates[:, 3 * H:4 * H])
        c_new = f_g * c0_ref[layer] + i_g * g_g                   # (TB, H) f32
        h = o_g * jnp.tanh(c_new)                                 # (TB, H) f32

    # fused output heads (key | value_mu | value_logvar), lane-dense (TB, Op)
    out_ref[...] = (jnp.dot(h.astype(jnp.bfloat16), wo_ref[...],
                            preferred_element_type=jnp.float32) + bo_ref[...])


# ---------------------------------------------------------------------------
# One-time parameter packing (hoisted out of the per-call path)
# ---------------------------------------------------------------------------
def pack_params(params, *, n_layers, hidden_size, input_size,
                output_key_size, output_value_size):
    H, K, V = hidden_size, output_key_size, output_value_size
    Gp = _round_up(4 * H, 128)
    Op = _round_up(K + 2 * V, 128)
    Lr = max(n_layers - 1, 1)
    f32, bf16 = jnp.float32, jnp.bfloat16

    # layer 0 with the embed Linear folded in (exact fold, f32, then bf16 cast)
    w0_full = params["w_embed"] @ params["w_ih"][0]                       # (I, 4H)
    b0_full = params["b_embed"] @ params["w_ih"][0] + params["b_gate"][0]  # (4H,)
    w0 = jnp.zeros((input_size, Gp), f32).at[:, :4 * H].set(w0_full).astype(bf16)
    b0 = jnp.zeros((1, Gp), f32).at[0, :4 * H].set(b0_full)

    wih = jnp.zeros((Lr, H, Gp), f32)
    bg = jnp.zeros((Lr, 1, Gp), f32)
    whh = jnp.zeros((n_layers, H, Gp), f32)
    for layer in range(n_layers):
        whh = whh.at[layer, :, :4 * H].set(params["w_hh"][layer])
        if layer >= 1:
            wih = wih.at[layer - 1, :, :4 * H].set(params["w_ih"][layer])
            bg = bg.at[layer - 1, 0, :4 * H].set(params["b_gate"][layer])
    wih = wih.astype(bf16)
    whh = whh.astype(bf16)

    wo = jnp.zeros((H, Op), f32)
    wo = wo.at[:, :K].set(params["w_key"])
    wo = wo.at[:, K:K + V].set(params["w_mu"])
    wo = wo.at[:, K + V:K + 2 * V].set(params["w_logvar"])
    wo = wo.astype(bf16)
    bo = jnp.zeros((1, Op), f32)
    bo = bo.at[0, :K].set(params["b_key"])
    bo = bo.at[0, K:K + V].set(params["b_mu"])
    bo = bo.at[0, K + V:K + 2 * V].set(params["b_logvar"])

    return {"w0": w0, "b0": b0, "wih": wih, "whh": whh, "bg": bg,
            "wo": wo, "bo": bo}


def _choose_batch_tile(batch):
    """Multiple-of-8 tile <= 512 with small padding waste; >=2 tiles when possible
    so the 'parallel' batch axis shards across v7x's 2 TensorCores."""
    bp8 = _round_up(max(batch, 1), 8)
    cap = 512
    if bp8 <= 8:
        return 8, 8
    n_tiles = max(2, _cdiv(bp8, cap))
    tb = _round_up(_cdiv(bp8, n_tiles), 8)
    bp = _round_up(bp8, tb)
    return tb, bp


def _vmem_capacity_bytes():
    try:
        info = pltpu.get_tpu_info()
        cap = getattr(info, "vmem_capacity_bytes", None)
        if cap:
            return int(cap)
    except Exception:
        pass
    return 128 * 1024 * 1024


# ---------------------------------------------------------------------------
# Forward wrapper
# ---------------------------------------------------------------------------
def kv_lstm_forward(x, packed, h0, c0, *, n_layers, hidden_size,
                    output_key_size, output_value_size, input_size):
    # input.view(-1, input_size)
    x2d = x.reshape(-1, input_size).astype(jnp.float32)
    batch = x2d.shape[0]

    H, K, V = hidden_size, output_key_size, output_value_size
    Gp = _round_up(4 * H, 128)
    Op = _round_up(K + 2 * V, 128)
    Lr = max(n_layers - 1, 1)
    f32 = jnp.float32

    TB, Bp = _choose_batch_tile(batch)
    grid = (Bp // TB,)

    xp = jnp.zeros((Bp, input_size), f32).at[:batch].set(x2d)
    h0p = jnp.zeros((n_layers, Bp, H), f32).at[:, :batch].set(h0)
    c0p = jnp.zeros((n_layers, Bp, H), f32).at[:, :batch].set(c0)

    # ---- chip-aware VMEM handling ------------------------------------------
    vmem_cap = _vmem_capacity_bytes()
    small_vmem = vmem_cap <= 64 * 1024 * 1024          # v7x
    # constant-index_map weight blocks: single-buffer them on small-VMEM chips
    wmode = {"pipeline_mode": pl.Buffered(1)} if small_vmem else {}

    def wspec(shape):
        return pl.BlockSpec(shape, lambda i, _n=len(shape): (0,) * _n, **wmode)

    in_specs = [
        pl.BlockSpec((TB, input_size), lambda i: (i, 0)),       # x (tiled)
        wspec((input_size, Gp)),                                # w0 (embed folded)
        wspec((1, Gp)),                                         # b0
        wspec((Lr, H, Gp)),                                     # w_ih layers 1..L-1
        wspec((n_layers, H, Gp)),                               # w_hh all layers
        wspec((Lr, 1, Gp)),                                     # gate bias 1..L-1
        pl.BlockSpec((n_layers, TB, H), lambda i: (0, i, 0)),   # h0 (tiled)
        pl.BlockSpec((n_layers, TB, H), lambda i: (0, i, 0)),   # c0 (tiled)
        wspec((H, Op)),                                         # fused head W
        wspec((1, Op)),                                         # fused head b
    ]
    out_specs = pl.BlockSpec((TB, Op), lambda i: (i, 0))        # lane-dense slab

    weight_bytes = (2 * (input_size * Gp + Lr * H * Gp + n_layers * H * Gp + H * Op)
                    + 4 * ((1 + Lr) * Gp + Op))
    act_bytes = 4 * TB * (input_size + 2 * n_layers * H + Op)
    weight_buf = 1 if small_vmem else 2
    vmem_limit = weight_buf * weight_bytes + 6 * act_bytes + (2 << 20)
    vmem_limit = max(vmem_limit, 16 << 20)
    vmem_limit = int(min(vmem_limit, int(vmem_cap * 0.75)))

    flops = 2 * Bp * (input_size * Gp + (2 * n_layers - 1) * H * Gp + H * Op)
    transcendentals = Bp * n_layers * 5 * H
    bytes_accessed = weight_bytes + 4 * Bp * (input_size + 2 * n_layers * H + Op)

    kernel = functools.partial(_kv_lstm_kernel, n_layers, H)

    out = pl.pallas_call(
        kernel,
        out_shape=jax.ShapeDtypeStruct((Bp, Op), jnp.float32),
        grid=grid,
        in_specs=in_specs,
        out_specs=out_specs,
        compiler_params=pltpu.CompilerParams(
            dimension_semantics=("parallel",),
            vmem_limit_bytes=vmem_limit),
        cost_estimate=pl.CostEstimate(
            flops=flops,
            transcendentals=transcendentals,
            bytes_accessed=bytes_accessed),
    )(xp, packed["w0"], packed["b0"], packed["wih"], packed["whh"],
      packed["bg"], h0p, c0p, packed["wo"], packed["bo"])

    key = out[:batch, :K]
    value_mu = out[:batch, K:K + V]
    value_logvar = out[:batch, K + V:K + 2 * V]
    return key, value_mu, value_logvar


# ---------------------------------------------------------------------------
# Parameters + pure-JAX reference (PyTorch semantics, f32) for the sanity check
# ---------------------------------------------------------------------------
def init_params(rng, input_size, hidden_size, output_key_size,
                output_value_size, n_layers):
    keys = jax.random.split(rng, 4 * n_layers + 8)
    k = iter(keys)

    def lin_w(kk, fan_in, fan_out):
        return jax.random.normal(kk, (fan_in, fan_out), jnp.float32) * 0.1

    def lin_b(kk, fan_out):
        return jax.random.normal(kk, (fan_out,), jnp.float32) * 0.1

    params = {}
    params["w_embed"] = lin_w(next(k), input_size, hidden_size)
    params["b_embed"] = lin_b(next(k), hidden_size)

    w_ih, w_hh, b_gate = [], [], []
    for _ in range(n_layers):
        w_ih.append(lin_w(next(k), hidden_size, 4 * hidden_size))
        w_hh.append(lin_w(next(k), hidden_size, 4 * hidden_size))
        b_ih = lin_b(next(k), 4 * hidden_size)
        b_hh = lin_b(next(k), 4 * hidden_size)
        b_gate.append(b_ih + b_hh)              # PyTorch LSTMCell adds both biases
    params["w_ih"] = jnp.stack(w_ih)            # (L, H, 4H)
    params["w_hh"] = jnp.stack(w_hh)            # (L, H, 4H)
    params["b_gate"] = jnp.stack(b_gate)        # (L, 4H)

    params["w_key"] = lin_w(next(k), hidden_size, output_key_size)
    params["b_key"] = lin_b(next(k), output_key_size)
    params["w_mu"] = lin_w(next(k), hidden_size, output_value_size)
    params["b_mu"] = lin_b(next(k), output_value_size)
    params["w_logvar"] = lin_w(next(k), hidden_size, output_value_size)
    params["b_logvar"] = lin_b(next(k), output_value_size)
    return params


def reference_forward(x, params, h0, c0, *, n_layers, hidden_size, input_size):
    x2d = x.reshape(-1, input_size)
    h_in = x2d @ params["w_embed"] + params["b_embed"]
    H = hidden_size
    for layer in range(n_layers):
        gates = (h_in @ params["w_ih"][layer]
                 + h0[layer] @ params["w_hh"][layer]
                 + params["b_gate"][layer])
        i_g = jax.nn.sigmoid(gates[:, :H])
        f_g = jax.nn.sigmoid(gates[:, H:2 * H])
        g_g = jnp.tanh(gates[:, 2 * H:3 * H])
        o_g = jax.nn.sigmoid(gates[:, 3 * H:])
        c_new = f_g * c0[layer] + i_g * g_g
        h_in = o_g * jnp.tanh(c_new)
    key = h_in @ params["w_key"] + params["b_key"]
    mu = h_in @ params["w_mu"] + params["b_mu"]
    logvar = h_in @ params["w_logvar"] + params["b_logvar"]
    return key, mu, logvar


if __name__ == "__main__":
    input_size = 16
    hidden_size = 32
    output_key_size = 8
    output_value_size = 8
    n_layers = 2
    batch_size = 4

    root = jax.random.PRNGKey(0)
    k_param, k_x = jax.random.split(root)

    params = init_params(k_param, input_size, hidden_size,
                         output_key_size, output_value_size, n_layers)
    x = jax.random.normal(k_x, (batch_size, input_size), jnp.float32)

    # init_hidden(): zeros per layer
    h0 = jnp.zeros((n_layers, batch_size, hidden_size), jnp.float32)
    c0 = jnp.zeros((n_layers, batch_size, hidden_size), jnp.float32)

    # pack once (not in the per-call path)
    packed = pack_params(params, n_layers=n_layers, hidden_size=hidden_size,
                         input_size=input_size, output_key_size=output_key_size,
                         output_value_size=output_value_size)

    key, value_mu, value_logvar = kv_lstm_forward(
        x, packed, h0, c0,
        n_layers=n_layers, hidden_size=hidden_size,
        output_key_size=output_key_size, output_value_size=output_value_size,
        input_size=input_size)
    jax.block_until_ready((key, value_mu, value_logvar))

    # sanity check against pure-JAX f32 reference (bf16 MXU operands -> looser tol)
    rk, rmu, rlv = reference_forward(
        x, params, h0, c0,
        n_layers=n_layers, hidden_size=hidden_size, input_size=input_size)
    assert jnp.allclose(key, rk, atol=2e-2, rtol=2e-2)
    assert jnp.allclose(value_mu, rmu, atol=2e-2, rtol=2e-2)
    assert jnp.allclose(value_logvar, rlv, atol=2e-2, rtol=2e-2)

    print("KERNEL_OK")
</pallas_src>

<mosaic_0001>
module attributes {stable_mosaic.version = 11 : i64} {
  func.func @_kv_lstm_kernel(%arg0: i32, %arg1: memref<8x16xf32, #tpu.memory_space<vmem>>, %arg2: memref<16x128xbf16, #tpu.memory_space<vmem>>, %arg3: memref<1x128xf32, #tpu.memory_space<vmem>>, %arg4: memref<1x32x128xbf16, #tpu.memory_space<vmem>>, %arg5: memref<2x32x128xbf16, #tpu.memory_space<vmem>>, %arg6: memref<1x1x128xf32, #tpu.memory_space<vmem>>, %arg7: memref<2x8x32xf32, #tpu.memory_space<vmem>>, %arg8: memref<2x8x32xf32, #tpu.memory_space<vmem>>, %arg9: memref<32x128xbf16, #tpu.memory_space<vmem>>, %arg10: memref<1x128xf32, #tpu.memory_space<vmem>>, %arg11: memref<8x128xf32, #tpu.memory_space<vmem>>) attributes {dimension_semantics = [#tpu.dimension_semantics<parallel>], iteration_bounds = array<i64: 1>, scalar_prefetch = 0 : i64, scratch_operands = 0 : i64, tpu.core_type = #tpu.core_type<tc>, window_params = [{transform_indices = @transform_0, window_bounds = array<i64: 8, 16>}, {pipeline_mode = #tpu.pipeline_mode<synchronous>, transform_indices = @transform_1, window_bounds = array<i64: 16, 128>}, {pipeline_mode = #tpu.pipeline_mode<synchronous>, transform_indices = @transform_2, window_bounds = array<i64: 1, 128>}, {pipeline_mode = #tpu.pipeline_mode<synchronous>, transform_indices = @transform_3, window_bounds = array<i64: 1, 32, 128>}, {pipeline_mode = #tpu.pipeline_mode<synchronous>, transform_indices = @transform_4, window_bounds = array<i64: 2, 32, 128>}, {pipeline_mode = #tpu.pipeline_mode<synchronous>, transform_indices = @transform_5, window_bounds = array<i64: 1, 1, 128>}, {transform_indices = @transform_6, window_bounds = array<i64: 2, 8, 32>}, {transform_indices = @transform_7, window_bounds = array<i64: 2, 8, 32>}, {pipeline_mode = #tpu.pipeline_mode<synchronous>, transform_indices = @transform_8, window_bounds = array<i64: 32, 128>}, {pipeline_mode = #tpu.pipeline_mode<synchronous>, transform_indices = @transform_9, window_bounds = array<i64: 1, 128>}, {transform_indices = @transform_10, window_bounds = array<i64: 8, 128>}]} {
    %c0 = arith.constant 0 : index
    %c0_0 = arith.constant 0 : index
    %0 = vector.load %arg1[%c0, %c0_0] : memref<8x16xf32, #tpu.memory_space<vmem>>, vector<8x16xf32>
    %1 = arith.truncf %0 : vector<8x16xf32> to vector<8x16xbf16>
    %c0_1 = arith.constant 0 : index
    %c0_2 = arith.constant 0 : index
    %2 = vector.load %arg2[%c0_1, %c0_2] : memref<16x128xbf16, #tpu.memory_space<vmem>>, vector<16x128xbf16>
    %c0_3 = arith.constant 0 : index
    %c0_4 = arith.constant 0 : index
    %3 = vector.load %arg3[%c0_3, %c0_4] : memref<1x128xf32, #tpu.memory_space<vmem>>, vector<1x128xf32>
    %c0_5 = arith.constant 0 : index
    %c0_6 = arith.constant 0 : index
    %c0_7 = arith.constant 0 : index
    %4 = vector.load %arg7[%c0_5, %c0_6, %c0_7] : memref<2x8x32xf32, #tpu.memory_space<vmem>>, vector<1x8x32xf32>
    %5 = vector.shape_cast %4 : vector<1x8x32xf32> to vector<8x32xf32>
    %6 = arith.truncf %5 : vector<8x32xf32> to vector<8x32xbf16>
    %cst = arith.constant dense<0.000000e+00> : vector<8x128xf32>
    %7 = tpu.matmul %1, %2, %cst {dimension_numbers = #tpu.dot_dimension_numbers<[1], [0], [0], [1], [0, 0, 1, 1], [], []>} : vector<8x16xbf16>, vector<16x128xbf16>, vector<8x128xf32> -> vector<8x128xf32>
    %c0_8 = arith.constant 0 : index
    %c0_9 = arith.constant 0 : index
    %c0_10 = arith.constant 0 : index
    %8 = vector.load %arg5[%c0_8, %c0_9, %c0_10] : memref<2x32x128xbf16, #tpu.memory_space<vmem>>, vector<1x32x128xbf16>
    %9 = vector.shape_cast %8 : vector<1x32x128xbf16> to vector<32x128xbf16>
    %cst_11 = arith.constant dense<0.000000e+00> : vector<8x128xf32>
    %10 = tpu.matmul %6, %9, %cst_11 {dimension_numbers = #tpu.dot_dimension_numbers<[1], [0], [0], [1], [0, 0, 1, 1], [], []>} : vector<8x32xbf16>, vector<32x128xbf16>, vector<8x128xf32> -> vector<8x128xf32>
    %11 = arith.addf %7, %10 : vector<8x128xf32>
    %12 = vector.broadcast %3 : vector<1x128xf32> to vector<8x128xf32>
    %13 = arith.addf %11, %12 : vector<8x128xf32>
    %14 = vector.extract_strided_slice %13 {offsets = [0, 0], sizes = [8, 32], strides = [1, 1]} : vector<8x128xf32> to vector<8x32xf32>
    %15 = arith.negf %14 : vector<8x32xf32>
    %16 = math.exp %15 : vector<8x32xf32>
    %cst_12 = arith.constant 1.000000e+00 : f32
    %17 = vector.broadcast %cst_12 : f32 to vector<8x32xf32>
    %18 = arith.addf %17, %16 : vector<8x32xf32>
    %19 = arith.divf %17, %18 : vector<8x32xf32>
    %20 = vector.extract_strided_slice %13 {offsets = [0, 32], sizes = [8, 32], strides = [1, 1]} : vector<8x128xf32> to vector<8x32xf32>
    %21 = arith.negf %20 : vector<8x32xf32>
    %22 = math.exp %21 : vector<8x32xf32>
    %cst_13 = arith.constant 1.000000e+00 : f32
    %23 = vector.broadcast %cst_13 : f32 to vector<8x32xf32>
    %24 = arith.addf %23, %22 : vector<8x32xf32>
    %25 = arith.divf %23, %24 : vector<8x32xf32>
    %26 = vector.extract_strided_slice %13 {offsets = [0, 64], sizes = [8, 32], strides = [1, 1]} : vector<8x128xf32> to vector<8x32xf32>
    %27 = math.tanh %26 : vector<8x32xf32>
    %28 = vector.extract_strided_slice %13 {offsets = [0, 96], sizes = [8, 32], strides = [1, 1]} : vector<8x128xf32> to vector<8x32xf32>
    %29 = arith.negf %28 : vector<8x32xf32>
    %30 = math.exp %29 : vector<8x32xf32>
    %cst_14 = arith.constant 1.000000e+00 : f32
    %31 = vector.broadcast %cst_14 : f32 to vector<8x32xf32>
    %32 = arith.addf %31, %30 : vector<8x32xf32>
    %33 = arith.divf %31, %32 : vector<8x32xf32>
    %c0_15 = arith.constant 0 : index
    %c0_16 = arith.constant 0 : index
    %c0_17 = arith.constant 0 : index
    %34 = vector.load %arg8[%c0_15, %c0_16, %c0_17] : memref<2x8x32xf32, #tpu.memory_space<vmem>>, vector<1x8x32xf32>
    %35 = vector.shape_cast %34 : vector<1x8x32xf32> to vector<8x32xf32>
    %36 = arith.mulf %25, %35 : vector<8x32xf32>
    %37 = arith.mulf %19, %27 : vector<8x32xf32>
    %38 = arith.addf %36, %37 : vector<8x32xf32>
    %39 = math.tanh %38 : vector<8x32xf32>
    %40 = arith.mulf %33, %39 : vector<8x32xf32>
    %41 = arith.truncf %40 : vector<8x32xf32> to vector<8x32xbf16>
    %c0_18 = arith.constant 0 : index
    %c0_19 = arith.constant 0 : index
    %c0_20 = arith.constant 0 : index
    %42 = vector.load %arg4[%c0_18, %c0_19, %c0_20] : memref<1x32x128xbf16, #tpu.memory_space<vmem>>, vector<1x32x128xbf16>
    %43 = vector.shape_cast %42 : vector<1x32x128xbf16> to vector<32x128xbf16>
    %c0_21 = arith.constant 0 : index
    %c0_22 = arith.constant 0 : index
    %c0_23 = arith.constant 0 : index
    %44 = vector.load %arg6[%c0_21, %c0_22, %c0_23] : memref<1x1x128xf32, #tpu.memory_space<vmem>>, vector<1x1x128xf32>
    %45 = vector.shape_cast %44 : vector<1x1x128xf32> to vector<1x128xf32>
    %c1 = arith.constant 1 : index
    %c0_24 = arith.constant 0 : index
    %c0_25 = arith.constant 0 : index
    %46 = vector.load %arg7[%c1, %c0_24, %c0_25] : memref<2x8x32xf32, #tpu.memory_space<vmem>>, vector<1x8x32xf32>
    %47 = vector.shape_cast %46 : vector<1x8x32xf32> to vector<8x32xf32>
    %48 = arith.truncf %47 : vector<8x32xf32> to vector<8x32xbf16>
    %cst_26 = arith.constant dense<0.000000e+00> : vector<8x128xf32>
    %49 = tpu.matmul %41, %43, %cst_26 {dimension_numbers = #tpu.dot_dimension_numbers<[1], [0], [0], [1], [0, 0, 1, 1], [], []>} : vector<8x32xbf16>, vector<32x128xbf16>, vector<8x128xf32> -> vector<8x128xf32>
    %c1_27 = arith.constant 1 : index
    %c0_28 = arith.constant 0 : index
    %c0_29 = arith.constant 0 : index
    %50 = vector.load %arg5[%c1_27, %c0_28, %c0_29] : memref<2x32x128xbf16, #tpu.memory_space<vmem>>, vector<1x32x128xbf16>
    %51 = vector.shape_cast %50 : vector<1x32x128xbf16> to vector<32x128xbf16>
    %cst_30 = arith.constant dense<0.000000e+00> : vector<8x128xf32>
    %52 = tpu.matmul %48, %51, %cst_30 {dimension_numbers = #tpu.dot_dimension_numbers<[1], [0], [0], [1], [0, 0, 1, 1], [], []>} : vector<8x32xbf16>, vector<32x128xbf16>, vector<8x128xf32> -> vector<8x128xf32>
    %53 = arith.addf %49, %52 : vector<8x128xf32>
    %54 = vector.broadcast %45 : vector<1x128xf32> to vector<8x128xf32>
    %55 = arith.addf %53, %54 : vector<8x128xf32>
    %56 = vector.extract_strided_slice %55 {offsets = [0, 0], sizes = [8, 32], strides = [1, 1]} : vector<8x128xf32> to vector<8x32xf32>
    %57 = arith.negf %56 : vector<8x32xf32>
    %58 = math.exp %57 : vector<8x32xf32>
    %cst_31 = arith.constant 1.000000e+00 : f32
    %59 = vector.broadcast %cst_31 : f32 to vector<8x32xf32>
    %60 = arith.addf %59, %58 : vector<8x32xf32>
    %61 = arith.divf %59, %60 : vector<8x32xf32>
    %62 = vector.extract_strided_slice %55 {offsets = [0, 32], sizes = [8, 32], strides = [1, 1]} : vector<8x128xf32> to vector<8x32xf32>
    %63 = arith.negf %62 : vector<8x32xf32>
    %64 = math.exp %63 : vector<8x32xf32>
    %cst_32 = arith.constant 1.000000e+00 : f32
    %65 = vector.broadcast %cst_32 : f32 to vector<8x32xf32>
    %66 = arith.addf %65, %64 : vector<8x32xf32>
    %67 = arith.divf %65, %66 : vector<8x32xf32>
    %68 = vector.extract_strided_slice %55 {offsets = [0, 64], sizes = [8, 32], strides = [1, 1]} : vector<8x128xf32> to vector<8x32xf32>
    %69 = math.tanh %68 : vector<8x32xf32>
    %70 = vector.extract_strided_slice %55 {offsets = [0, 96], sizes = [8, 32], strides = [1, 1]} : vector<8x128xf32> to vector<8x32xf32>
    %71 = arith.negf %70 : vector<8x32xf32>
    %72 = math.exp %71 : vector<8x32xf32>
    %cst_33 = arith.constant 1.000000e+00 : f32
    %73 = vector.broadcast %cst_33 : f32 to vector<8x32xf32>
    %74 = arith.addf %73, %72 : vector<8x32xf32>
    %75 = arith.divf %73, %74 : vector<8x32xf32>
    %c1_34 = arith.constant 1 : index
    %c0_35 = arith.constant 0 : index
    %c0_36 = arith.constant 0 : index
    %76 = vector.load %arg8[%c1_34, %c0_35, %c0_36] : memref<2x8x32xf32, #tpu.memory_space<vmem>>, vector<1x8x32xf32>
    %77 = vector.shape_cast %76 : vector<1x8x32xf32> to vector<8x32xf32>
    %78 = arith.mulf %67, %77 : vector<8x32xf32>
    %79 = arith.mulf %61, %69 : vector<8x32xf32>
    %80 = arith.addf %78, %79 : vector<8x32xf32>
    %81 = math.tanh %80 : vector<8x32xf32>
    %82 = arith.mulf %75, %81 : vector<8x32xf32>
    %83 = arith.truncf %82 : vector<8x32xf32> to vector<8x32xbf16>
    %c0_37 = arith.constant 0 : index
    %c0_38 = arith.constant 0 : index
    %84 = vector.load %arg9[%c0_37, %c0_38] : memref<32x128xbf16, #tpu.memory_space<vmem>>, vector<32x128xbf16>
    %cst_39 = arith.constant dense<0.000000e+00> : vector<8x128xf32>
    %85 = tpu.matmul %83, %84, %cst_39 {dimension_numbers = #tpu.dot_dimension_numbers<[1], [0], [0], [1], [0, 0, 1, 1], [], []>} : vector<8x32xbf16>, vector<32x128xbf16>, vector<8x128xf32> -> vector<8x128xf32>
    %c0_40 = arith.constant 0 : index
    %c0_41 = arith.constant 0 : index
    %86 = vector.load %arg10[%c0_40, %c0_41] : memref<1x128xf32, #tpu.memory_space<vmem>>, vector<1x128xf32>
    %87 = vector.broadcast %86 : vector<1x128xf32> to vector<8x128xf32>
    %88 = arith.addf %85, %87 : vector<8x128xf32>
    %c0_42 = arith.constant 0 : index
    %c0_43 = arith.constant 0 : index
    %89 = vector.load %arg11[%c0_42, %c0_43] : memref<8x128xf32, #tpu.memory_space<vmem>>, vector<8x128xf32>
    tpu.vector_store %arg11[%c0_42, %c0_43], %88 {strides = array<i32>} : memref<8x128xf32, #tpu.memory_space<vmem>>, vector<8x128xf32>,
    return
  }
  func.func @transform_0(%arg0: i32) -> (i32, i32) {
    %c0_i32 = arith.constant 0 : i32
    %c0_i32_0 = arith.constant 0 : i32
    return %arg0, %c0_i32 : i32, i32
  }
  func.func @transform_1(%arg0: i32) -> (i32, i32) {
    %c0_i32 = arith.constant 0 : i32
    %c0_i32_0 = arith.constant 0 : i32
    %c0_i32_1 = arith.constant 0 : i32
    return %c0_i32, %c0_i32_0 : i32, i32
  }
  func.func @transform_2(%arg0: i32) -> (i32, i32) {
    %c0_i32 = arith.constant 0 : i32
    %c0_i32_0 = arith.constant 0 : i32
    %c0_i32_1 = arith.constant 0 : i32
    return %c0_i32, %c0_i32_0 : i32, i32
  }
  func.func @transform_3(%arg0: i32) -> (i32, i32, i32) {
    %c0_i32 = arith.constant 0 : i32
    %c0_i32_0 = arith.constant 0 : i32
    %c0_i32_1 = arith.constant 0 : i32
    %c0_i32_2 = arith.constant 0 : i32
    return %c0_i32, %c0_i32_0, %c0_i32_1 : i32, i32, i32
  }
  func.func @transform_4(%arg0: i32) -> (i32, i32, i32) {
    %c0_i32 = arith.constant 0 : i32
    %c0_i32_0 = arith.constant 0 : i32
    %c0_i32_1 = arith.constant 0 : i32
    %c0_i32_2 = arith.constant 0 : i32
    return %c0_i32, %c0_i32_0, %c0_i32_1 : i32, i32, i32
  }
  func.func @transform_5(%arg0: i32) -> (i32, i32, i32) {
    %c0_i32 = arith.constant 0 : i32
    %c0_i32_0 = arith.constant 0 : i32
    %c0_i32_1 = arith.constant 0 : i32
    %c0_i32_2 = arith.constant 0 : i32
    return %c0_i32, %c0_i32_0, %c0_i32_1 : i32, i32, i32
  }
  func.func @transform_6(%arg0: i32) -> (i32, i32, i32) {
    %c0_i32 = arith.constant 0 : i32
    %c0_i32_0 = arith.constant 0 : i32
    %c0_i32_1 = arith.constant 0 : i32
    return %c0_i32, %arg0, %c0_i32_0 : i32, i32, i32
  }
  func.func @transform_7(%arg0: i32) -> (i32, i32, i32) {
    %c0_i32 = arith.constant 0 : i32
    %c0_i32_0 = arith.constant 0 : i32
    %c0_i32_1 = arith.constant 0 : i32
    return %c0_i32, %arg0, %c0_i32_0 : i32, i32, i32
  }
  func.func @transform_8(%arg0: i32) -> (i32, i32) {
    %c0_i32 = arith.constant 0 : i32
    %c0_i32_0 = arith.constant 0 : i32
    %c0_i32_1 = arith.constant 0 : i32
    return %c0_i32, %c0_i32_0 : i32, i32
  }
  func.func @transform_9(%arg0: i32) -> (i32, i32) {
    %c0_i32 = arith.constant 0 : i32
    %c0_i32_0 = arith.constant 0 : i32
    %c0_i32_1 = arith.constant 0 : i32
    return %c0_i32, %c0_i32_0 : i32, i32
  }
  func.func @transform_10(%arg0: i32) -> (i32, i32) {
    %c0_i32 = arith.constant 0 : i32
    %c0_i32_0 = arith.constant 0 : i32
    return %arg0, %c0_i32 : i32, i32
  }
}

</mosaic_0001>

<llo_original>
// kernel: tpu_custom_call.1
$region0: #{tpu_custom_call.1}
  #allocation0 [shape = 'u32[]', space=smem, size = 0x4, offset = 0x4, fixed_abs, tag = 'smem constant byte address 0x4 - core index']
  #allocation1 [shape = 'u32[144,128]{1,0:T(1,128)}', space=vmem, size = 0x12000, scoped, tag = 'internal scratch']
  %s0 = inlined_call_operand.hbm [shape: f32[8,16], index: 0, kind: input, shape index: {}]
  %s1 = inlined_call_operand.hbm [shape: bf16[16,128], index: 1, kind: input, shape index: {}]
  %s2 = inlined_call_operand.vmem [shape: f32[1,128], index: 2, kind: input, shape index: {}]
  %s3 = inlined_call_operand.hbm [shape: bf16[1,32,128], index: 3, kind: input, shape index: {}]
  %s4 = inlined_call_operand.hbm [shape: bf16[2,32,128], index: 4, kind: input, shape index: {}]
  %s5 = inlined_call_operand.vmem [shape: f32[1,1,128], index: 5, kind: input, shape index: {}]
  %s6 = inlined_call_operand.hbm [shape: f32[2,8,32], index: 6, kind: input, shape index: {}]
  %s7 = inlined_call_operand.hbm [shape: f32[2,8,32], index: 7, kind: input, shape index: {}]
  %s8 = inlined_call_operand.hbm [shape: bf16[32,128], index: 8, kind: input, shape index: {}]
  %s9 = inlined_call_operand.vmem [shape: f32[1,128], index: 9, kind: input, shape index: {}]
  %s10 = inlined_call_operand.hbm [shape: f32[8,128], index: 10, kind: output, shape index: {}]
  %s11 = sld [smem:[#allocation0]]
  $region78: #{tpu_custom_call.1} parent=0
    _
  %s13 = ssub.s32 1, %s11
  %s14 = scalar_select 0, %s13, %s11
  $region1: #{tpu_custom_call.1} parent=0
    #allocation2 [shape = 'u8[4096]{0}', space=vmem, size = 0x1000, scoped, tag = 'input window, operand 0, single buffered']
    #allocation3 [shape = 's32[1]{0}', space=sflag, size = 0x4, scoped, tag = 'scoped memory for tpu_custom_call.1']
    #allocation4 [shape = 's32[1]{0}', space=sflag, size = 0x4, scoped, tag = 'scoped memory for tpu_custom_call.1']
    #allocation5 [shape = 'u8[4096]{0}', space=vmem, size = 0x1000, scoped, tag = 'input window, operand 1, single buffered']
    #allocation6 [shape = 's32[1]{0}', space=sflag, size = 0x4, scoped, tag = 'scoped memory for tpu_custom_call.1']
    #allocation7 [shape = 'u8[8192]{0}', space=vmem, size = 0x2000, scoped, tag = 'input window, operand 3, single buffered']
    #allocation8 [shape = 'u8[16384]{0}', space=vmem, size = 0x4000, scoped, tag = 'input window, operand 4, single buffered']
    #allocation9 [shape = 's32[1]{0}', space=sflag, size = 0x4, scoped, tag = 'scoped memory for tpu_custom_call.1']
    #allocation10 [shape = 'u8[8192]{0}', space=vmem, size = 0x2000, scoped, tag = 'input window, operand 6, single buffered']
    #allocation11 [shape = 'u8[8192]{0}', space=vmem, size = 0x2000, scoped, tag = 'input window, operand 7, single buffered']
    #allocation12 [shape = 's32[1]{0}', space=sflag, size = 0x4, scoped, tag = 'scoped memory for tpu_custom_call.1']
    #allocation13 [shape = 'u8[8192]{0}', space=vmem, size = 0x2000, scoped, tag = 'input window, operand 8, single buffered']
    #allocation14 [shape = 'u8[4096]{0}', space=vmem, size = 0x1000, scoped, tag = 'output window, operand 0, single buffered']
    %15 = vsyncpa [#allocation3], 0
    %16 = vsyncpa [#allocation6], 0
    %17 = vsyncpa [#allocation9], 0
    %18 = vsyncpa [#allocation12], 0
    %19 = vsyncpa [#allocation4], 0
    // Predicated region
    $region2: #{tpu_custom_call.1} parent=1 // pred_check
      _
    $region3: #{tpu_custom_call.1} parent=1 // pred_check_branch
      %21 = sbr.rel (0) target = $region5
    $region4: #{tpu_custom_call.1} parent=1 // pred_region
      %s23 = ssub.s32 128, 128
      %24 = vsyncadd [#allocation3], %s23
      %s26 = sshll.u32 [#allocation2], 4
      %s27 = int_to_ptr.vmem [resolvable:$true] %s26
      %29 = dma.hbm_to_vmem [thread:$0]  %s0, 128, %s27, [#allocation3]
    $region5: #{tpu_custom_call.1} parent=1 // pred_fallthru
      _
    // Predicated region
    $region6: #{tpu_custom_call.1} parent=1 // pred_check
      _
    $region7: #{tpu_custom_call.1} parent=1 // pred_check_branch
      %31 = sbr.rel (0) target = $region9
    $region8: #{tpu_custom_call.1} parent=1 // pred_region
      %s33 = ssub.s32 128, 128
      %34 = vsyncadd [#allocation6], %s33
      %s35 = sshll.u32 [#allocation5], 4
      %s36 = int_to_ptr.vmem [resolvable:$true] %s35
      %41 = dma.hbm_to_vmem [thread:$0]  %s1, 128, %s36, [#allocation6], 64, 64, 4
    $region9: #{tpu_custom_call.1} parent=1 // pred_fallthru
      _
    // Predicated region
    $region10: #{tpu_custom_call.1} parent=1 // pred_check
      _
    $region11: #{tpu_custom_call.1} parent=1 // pred_check_branch
      %43 = sbr.rel (0) target = $region13
    $region12: #{tpu_custom_call.1} parent=1 // pred_region
      _
    $region13: #{tpu_custom_call.1} parent=1 // pred_fallthru
      _
    // Predicated region
    $region14: #{tpu_custom_call.1} parent=1 // pred_check
      _
    $region15: #{tpu_custom_call.1} parent=1 // pred_check_branch
      %45 = sbr.rel (0) target = $region17
    $region16: #{tpu_custom_call.1} parent=1 // pred_region
      %s47 = ssub.s32 256, 256
      %48 = vsyncadd [#allocation6], %s47
      %s49 = sshll.u32 [#allocation7], 4
      %s50 = int_to_ptr.vmem [resolvable:$true] %s49
      %55 = dma.hbm_to_vmem [thread:$0]  %s3, 256, %s50, [#allocation6], 64, 64, 4
    $region17: #{tpu_custom_call.1} parent=1 // pred_fallthru
      _
    // Predicated region
    $region18: #{tpu_custom_call.1} parent=1 // pred_check
      _
    $region19: #{tpu_custom_call.1} parent=1 // pred_check_branch
      %57 = sbr.rel (0) target = $region21
    $region20: #{tpu_custom_call.1} parent=1 // pred_region
      %s59 = ssub.s32 512, 512
      %60 = vsyncadd [#allocation9], %s59
      %s61 = sshll.u32 [#allocation8], 4
      %s62 = int_to_ptr.vmem [resolvable:$true] %s61
      %67 = dma.hbm_to_vmem [thread:$0]  %s4, 512, %s62, [#allocation9], 64, 64, 4
    $region21: #{tpu_custom_call.1} parent=1 // pred_fallthru
      _
    // Predicated region
    $region22: #{tpu_custom_call.1} parent=1 // pred_check
      _
    $region23: #{tpu_custom_call.1} parent=1 // pred_check_branch
      %69 = sbr.rel (0) target = $region25
    $region24: #{tpu_custom_call.1} parent=1 // pred_region
      _
    $region25: #{tpu_custom_call.1} parent=1 // pred_fallthru
      _
    // Predicated region
    $region26: #{tpu_custom_call.1} parent=1 // pred_check
      _
    $region27: #{tpu_custom_call.1} parent=1 // pred_check_branch
      %71 = sbr.rel (0) target = $region29
    $region28: #{tpu_custom_call.1} parent=1 // pred_region
      %s73 = ssub.s32 256, 256
      %74 = vsyncadd [#allocation9], %s73
      %s75 = sshll.u32 [#allocation10], 4
      %s76 = int_to_ptr.vmem [resolvable:$true] %s75
      %81 = dma.hbm_to_vmem [thread:$0]  %s6, 256, %s76, [#allocation9], 128, 128, 8
    $region29: #{tpu_custom_call.1} parent=1 // pred_fallthru
      _
    // Predicated region
    $region30: #{tpu_custom_call.1} parent=1 // pred_check
      _
    $region31: #{tpu_custom_call.1} parent=1 // pred_check_branch
      %83 = sbr.rel (0) target = $region33
    $region32: #{tpu_custom_call.1} parent=1 // pred_region
      %s85 = ssub.s32 256, 256
      %86 = vsyncadd [#allocation12], %s85
      %s87 = sshll.u32 [#allocation11], 4
      %s88 = int_to_ptr.vmem [resolvable:$true] %s87
      %93 = dma.hbm_to_vmem [thread:$0]  %s7, 256, %s88, [#allocation12], 128, 128, 8
    $region33: #{tpu_custom_call.1} parent=1 // pred_fallthru
      _
    // Predicated region
    $region34: #{tpu_custom_call.1} parent=1 // pred_check
      _
    $region35: #{tpu_custom_call.1} parent=1 // pred_check_branch
      %95 = sbr.rel (0) target = $region37
    $region36: #{tpu_custom_call.1} parent=1 // pred_region
      %s97 = ssub.s32 256, 256
      %98 = vsyncadd [#allocation12], %s97
      %s99 = sshll.u32 [#allocation13], 4
      %s100 = int_to_ptr.vmem [resolvable:$true] %s99
      %105 = dma.hbm_to_vmem [thread:$0]  %s8, 256, %s100, [#allocation12], 64, 64, 4
    $region37: #{tpu_custom_call.1} parent=1 // pred_fallthru
      _
    // Predicated region
    $region38: #{tpu_custom_call.1} parent=1 // pred_check
      _
    $region39: #{tpu_custom_call.1} parent=1 // pred_check_branch
      %107 = sbr.rel (0) target = $region41
    $region40: #{tpu_custom_call.1} parent=1 // pred_region
      _
    $region41: #{tpu_custom_call.1} parent=1 // pred_fallthru
      _
    // Predicated region
    $region42: #{tpu_custom_call.1} parent=1 // pred_check
      _
    $region43: #{tpu_custom_call.1} parent=1 // pred_check_branch
      %109 = sbr.rel (0) target = $region45
    $region44: #{tpu_custom_call.1} parent=1 // pred_region
      %110 = dma.done [#allocation3], 128
    $region45: #{tpu_custom_call.1} parent=1 // pred_fallthru
      _
    // Predicated region
    $region46: #{tpu_custom_call.1} parent=1 // pred_check
      _
    $region47: #{tpu_custom_call.1} parent=1 // pred_check_branch
      %112 = sbr.rel (0) target = $region49
    $region48: #{tpu_custom_call.1} parent=1 // pred_region
      %113 = dma.done [#allocation6], 128
    $region49: #{tpu_custom_call.1} parent=1 // pred_fallthru
      _
    // Predicated region
    $region50: #{tpu_custom_call.1} parent=1 // pred_check
      _
    $region51: #{tpu_custom_call.1} parent=1 // pred_check_branch
      %115 = sbr.rel (0) target = $region53
    $region52: #{tpu_custom_call.1} parent=1 // pred_region
      %116 = dma.done [#allocation6], 256
    $region53: #{tpu_custom_call.1} parent=1 // pred_fallthru
      _
    // Predicated region
    $region54: #{tpu_custom_call.1} parent=1 // pred_check
      _
    $region55: #{tpu_custom_call.1} parent=1 // pred_check_branch
      %118 = sbr.rel (0) target = $region57
    $region56: #{tpu_custom_call.1} parent=1 // pred_region
      %119 = dma.done [#allocation9], 512
    $region57: #{tpu_custom_call.1} parent=1 // pred_fallthru
      _
    // Predicated region
    $region58: #{tpu_custom_call.1} parent=1 // pred_check
      _
    $region59: #{tpu_custom_call.1} parent=1 // pred_check_branch
      %121 = sbr.rel (0) target = $region61
    $region60: #{tpu_custom_call.1} parent=1 // pred_region
      %122 = dma.done [#allocation9], 256
    $region61: #{tpu_custom_call.1} parent=1 // pred_fallthru
      _
    // Predicated region
    $region62: #{tpu_custom_call.1} parent=1 // pred_check
      _
    $region63: #{tpu_custom_call.1} parent=1 // pred_check_branch
      %124 = sbr.rel (0) target = $region65
    $region64: #{tpu_custom_call.1} parent=1 // pred_region
      %125 = dma.done [#allocation12], 256
    $region65: #{tpu_custom_call.1} parent=1 // pred_fallthru
      _
    // Predicated region
    $region66: #{tpu_custom_call.1} parent=1 // pred_check
      _
    $region67: #{tpu_custom_call.1} parent=1 // pred_check_branch
      %127 = sbr.rel (0) target = $region69
    $region68: #{tpu_custom_call.1} parent=1 // pred_region
      %128 = dma.done [#allocation12], 256
    $region69: #{tpu_custom_call.1} parent=1 // pred_fallthru
      _
    %v130 = vld [vmem:[#allocation2] sm:$0xff]
    %v131 = vpack.c.bf16 %v130, %v130
    %v132 = vld [vmem:[#allocation5] sm:$0xf]
    %v133 = vld [vmem:[#allocation5 + $0x4] sm:$0xf]
    %v134 = vld [vmem:[%s2] sm:$0x1]
    %v135 = vld [vmem:[#allocation10] sm:$0xff]
    %v136 = vpack.c.bf16 %v135, %v135
    %v137 = vld [vmem:[#allocation8] sm:$0xf]
    %v138 = vld [vmem:[#allocation8 + $0x4] sm:$0xf]
    %v139 = vld [vmem:[#allocation8 + $0x8] sm:$0xf]
    %v140 = vld [vmem:[#allocation8 + $0xc] sm:$0xf]
    %v145 = vunpack.c.l.b16 %v137
    %v146 = vunpack.c.l.b16 %v138
    %v147 = vunpack.c.l.b16 %v139
    %v148 = vunpack.c.l.b16 %v140
    %v149 = vpack.c.b16 %v146, %v145
    %v150 = vpack.c.b16 %v148, %v147
    %vm153 = vcmask 261120
    %v155 = vsel %vm153, %v136, 0
    %157 = vmatprep.subr.bf16.mxu0 0
    %158 = vmatpush1.bf16.msra.mxu0 0
    %159 = vmatprep.subr.bf16.mxu0 0
    %160 = vmatpush1.bf16.msra.mxu0 0
    %161 = vmatprep.subr.bf16.mxu0 0
    %162 = vmatpush1.bf16.msra.mxu0 0
    %163 = vmatprep.subr.bf16.mxu0 0
    %164 = vmatpush1.bf16.msra.mxu0 0
    %165 = vmatprep.subr.bf16.mxu0 0
    %166 = vmatpush1.bf16.msra.mxu0 0
    %167 = vmatprep.subr.bf16.mxu0 0
    %168 = vmatpush1.bf16.msra.mxu0 0
    %169 = vmatprep.subr.bf16.mxu0 0
    %170 = vmatpush1.bf16.msra.mxu0 %v150
    %171 = vmatprep.subr.bf16.mxu0 0
    %172 = vmatpush1.bf16.msra.mxu0 %v149
    %173 = vmatprep.subr.bf16.mxu0 0
    %174 = vmatpush2.bf16.msra.mxu0 0
    %175 = vmatprep.subr.bf16.mxu0 0
    %176 = vmatpush2.bf16.msra.mxu0 0
    %177 = vmatprep.subr.bf16.mxu0 0
    %178 = vmatpush2.bf16.msra.mxu0 0
    %179 = vmatprep.subr.bf16.mxu0 0
    %180 = vmatpush2.bf16.msra.mxu0 0
    %181 = vmatprep.subr.bf16.mxu0 0
    %182 = vmatpush2.bf16.msra.mxu0 0
    %183 = vmatprep.subr.bf16.mxu0 0
    %184 = vmatpush2.bf16.msra.mxu0 0
    %185 = vmatprep.subr.bf16.mxu0 0
    %186 = vmatpush2.bf16.msra.mxu0 0
    %187 = vmatprep.subr.bf16.mxu0 0
    %188 = vmatpush2.bf16.msra.mxu0 0
    %189 = vmatprep.mubr.bf16.mxu0 0
    %190 = vmatmul.mubr.bf16.gmra.mxu0 %v155
    %v191 = vpop.f32.mrf.mxu0
    %v192 = vadd.f32 0.0, %v191
    %v193 = vpop.f32.mrf.mxu0
    %v194 = vpop.f32.mrf.mxu0
    %v195 = vpop.f32.mrf.mxu0
    %196 = vdwg.mxu0
    %v199 = vunpack.c.l.b16 %v132
    %v200 = vunpack.c.l.b16 %v133
    %v201 = vpack.c.b16 %v200, %v199
    %vm203 = vcmask 130048
    %v205 = vsel %vm203, %v131, 0
    %207 = vmatprep.subr.bf16.mxu0 0
    %208 = vmatpush1.bf16.msra.mxu0 0
    %209 = vmatprep.subr.bf16.mxu0 0
    %210 = vmatpush1.bf16.msra.mxu0 0
    %211 = vmatprep.subr.bf16.mxu0 0
    %212 = vmatpush1.bf16.msra.mxu0 0
    %213 = vmatprep.subr.bf16.mxu0 0
    %214 = vmatpush1.bf16.msra.mxu0 0
    %215 = vmatprep.subr.bf16.mxu0 0
    %216 = vmatpush1.bf16.msra.mxu0 0
    %217 = vmatprep.subr.bf16.mxu0 0
    %218 = vmatpush1.bf16.msra.mxu0 0
    %219 = vmatprep.subr.bf16.mxu0 0
    %220 = vmatpush1.bf16.msra.mxu0 0
    %221 = vmatprep.subr.bf16.mxu0 0
    %222 = vmatpush1.bf16.msra.mxu0 %v201
    %223 = vmatprep.subr.bf16.mxu0 0
    %224 = vmatpush2.bf16.msra.mxu0 0
    %225 = vmatprep.subr.bf16.mxu0 0
    %226 = vmatpush2.bf16.msra.mxu0 0
    %227 = vmatprep.subr.bf16.mxu0 0
    %228 = vmatpush2.bf16.msra.mxu0 0
    %229 = vmatprep.subr.bf16.mxu0 0
    %230 = vmatpush2.bf16.msra.mxu0 0
    %231 = vmatprep.subr.bf16.mxu0 0
    %232 = vmatpush2.bf16.msra.mxu0 0
    %233 = vmatprep.subr.bf16.mxu0 0
    %234 = vmatpush2.bf16.msra.mxu0 0
    %235 = vmatprep.subr.bf16.mxu0 0
    %236 = vmatpush2.bf16.msra.mxu0 0
    %237 = vmatprep.subr.bf16.mxu0 0
    %238 = vmatpush2.bf16.msra.mxu0 0
    %239 = vmatprep.mubr.bf16.mxu0 0
    %240 = vmatmul.mubr.bf16.gmra.mxu0 %v205
    %v241 = vpop.f32.mrf.mxu0
    %v242 = vadd.f32 %v192, %v241
    %v243 = vpop.f32.mrf.mxu0
    %v244 = vpop.f32.mrf.mxu0
    %v245 = vpop.f32.mrf.mxu0
    %246 = vdwg.mxu0
    %v248 = vlaneseq
    %v249 = vshrl.u32 %v248, 7
    %v250 = vsub.s32 0, %v249
    %v251 = vrot.slane %v134, %v250
    %v253 = vadd.f32 %v242, %v251
    %v254 = vxor.u32 %v253, 2147483648
    %v255 = vmul.f32 %v254, 1.442695
    %v256 = vpow.pop %v255
    %v257 = vadd.f32 %v256, 1.0
    %v258 = vrcp.pop %v257
    %v259 = vmul.f32 1.0, %v258
    %v260 = vtanh.pop %v253
    %v261 = vld [vmem:[#allocation11] sm:$0xff]
    %263 = vrot.lane.b32.xlu0 %v261, 32
    %v264 = vpop.permute.xlu0 %263
    %v266 = vmul.f32 %v259, %v264
    %268 = vrot.lane.b32.xlu0 %v260, 64
    %v269 = vpop.permute.xlu0 %268
    %v271 = vmul.f32 %v259, %v269
    %273 = vrot.lane.b32.xlu0 %v271, 32
    %v274 = vpop.permute.xlu0 %273
    %v276 = vadd.f32 %v266, %v274
    %v277 = vtanh.pop %v276
    %279 = vrot.lane.b32.xlu0 %v277, 64
    %v280 = vpop.permute.xlu0 %279
    %v282 = vmul.f32 %v259, %v280
    %v283 = vpack.c.bf16 %v282, %v282
    %v284 = vld [vmem:[#allocation7] sm:$0xf]
    %v285 = vld [vmem:[#allocation7 + $0x4] sm:$0xf]
    %v286 = vld [vmem:[#allocation7 + $0x8] sm:$0xf]
    %v287 = vld [vmem:[#allocation7 + $0xc] sm:$0xf]
    %v288 = vld [vmem:[%s5] sm:$0x1]
    %s289 = scalar_lea.vmem [#allocation10], 8
    %v290 = vld [vmem:[%s289] sm:$0xff]
    %v291 = vpack.c.bf16 %v290, %v290
    %s292 = scalar_lea.vmem [#allocation8], 16
    %v293 = vld [vmem:[%s292] sm:$0xf]
    %v294 = vld [vmem:[%s292 + $0x4] sm:$0xf]
    %v295 = vld [vmem:[%s292 + $0x8] sm:$0xf]
    %v296 = vld [vmem:[%s292 + $0xc] sm:$0xf]
    %v301 = vunpack.c.l.b16 %v293
    %v302 = vunpack.c.l.b16 %v294
    %v303 = vunpack.c.l.b16 %v295
    %v304 = vunpack.c.l.b16 %v296
    %v305 = vpack.c.b16 %v302, %v301
    %v306 = vpack.c.b16 %v304, %v303
    %v310 = vsel %vm153, %v291, 0
    %312 = vmatprep.subr.bf16.mxu0 0
    %313 = vmatpush1.bf16.msra.mxu0 0
    %314 = vmatprep.subr.bf16.mxu0 0
    %315 = vmatpush1.bf16.msra.mxu0 0
    %316 = vmatprep.subr.bf16.mxu0 0
    %317 = vmatpush1.bf16.msra.mxu0 0
    %318 = vmatprep.subr.bf16.mxu0 0
    %319 = vmatpush1.bf16.msra.mxu0 0
    %320 = vmatprep.subr.bf16.mxu0 0
    %321 = vmatpush1.bf16.msra.mxu0 0
    %322 = vmatprep.subr.bf16.mxu0 0
    %323 = vmatpush1.bf16.msra.mxu0 0
    %324 = vmatprep.subr.bf16.mxu0 0
    %325 = vmatpush1.bf16.msra.mxu0 %v306
    %326 = vmatprep.subr.bf16.mxu0 0
    %327 = vmatpush1.bf16.msra.mxu0 %v305
    %328 = vmatprep.subr.bf16.mxu0 0
    %329 = vmatpush2.bf16.msra.mxu0 0
    %330 = vmatprep.subr.bf16.mxu0 0
    %331 = vmatpush2.bf16.msra.mxu0 0
    %332 = vmatprep.subr.bf16.mxu0 0
    %333 = vmatpush2.bf16.msra.mxu0 0
    %334 = vmatprep.subr.bf16.mxu0 0
    %335 = vmatpush2.bf16.msra.mxu0 0
    %336 = vmatprep.subr.bf16.mxu0 0
    %337 = vmatpush2.bf16.msra.mxu0 0
    %338 = vmatprep.subr.bf16.mxu0 0
    %339 = vmatpush2.bf16.msra.mxu0 0
    %340 = vmatprep.subr.bf16.mxu0 0
    %341 = vmatpush2.bf16.msra.mxu0 0
    %342 = vmatprep.subr.bf16.mxu0 0
    %343 = vmatpush2.bf16.msra.mxu0 0
    %344 = vmatprep.mubr.bf16.mxu0 0
    %345 = vmatmul.mubr.bf16.gmra.mxu0 %v310
    %v346 = vpop.f32.mrf.mxu0
    %v347 = vadd.f32 0.0, %v346
    %v348 = vpop.f32.mrf.mxu0
    %v349 = vpop.f32.mrf.mxu0
    %v350 = vpop.f32.mrf.mxu0
    %351 = vdwg.mxu0
    %353 = vrot.lane.b32.xlu0 %v283, 32
    %v354 = vpop.permute.xlu0 %353
    %v359 = vunpack.c.l.b16 %v284
    %v360 = vunpack.c.l.b16 %v285
    %v361 = vunpack.c.l.b16 %v286
    %v362 = vunpack.c.l.b16 %v287
    %v363 = vpack.c.b16 %v360, %v359
    %v364 = vpack.c.b16 %v362, %v361
    %v368 = vsel %vm153, %v354, 0
    %370 = vmatprep.subr.bf16.mxu0 0
    %371 = vmatpush1.bf16.msra.mxu0 0
    %372 = vmatprep.subr.bf16.mxu0 0
    %373 = vmatpush1.bf16.msra.mxu0 0
    %374 = vmatprep.subr.bf16.mxu0 0
    %375 = vmatpush1.bf16.msra.mxu0 0
    %376 = vmatprep.subr.bf16.mxu0 0
    %377 = vmatpush1.bf16.msra.mxu0 0
    %378 = vmatprep.subr.bf16.mxu0 0
    %379 = vmatpush1.bf16.msra.mxu0 0
    %380 = vmatprep.subr.bf16.mxu0 0
    %381 = vmatpush1.bf16.msra.mxu0 0
    %382 = vmatprep.subr.bf16.mxu0 0
    %383 = vmatpush1.bf16.msra.mxu0 %v364
    %384 = vmatprep.subr.bf16.mxu0 0
    %385 = vmatpush1.bf16.msra.mxu0 %v363
    %386 = vmatprep.subr.bf16.mxu0 0
    %387 = vmatpush2.bf16.msra.mxu0 0
    %388 = vmatprep.subr.bf16.mxu0 0
    %389 = vmatpush2.bf16.msra.mxu0 0
    %390 = vmatprep.subr.bf16.mxu0 0
    %391 = vmatpush2.bf16.msra.mxu0 0
    %392 = vmatprep.subr.bf16.mxu0 0
    %393 = vmatpush2.bf16.msra.mxu0 0
    %394 = vmatprep.subr.bf16.mxu0 0
    %395 = vmatpush2.bf16.msra.mxu0 0
    %396 = vmatprep.subr.bf16.mxu0 0
    %397 = vmatpush2.bf16.msra.mxu0 0
    %398 = vmatprep.subr.bf16.mxu0 0
    %399 = vmatpush2.bf16.msra.mxu0 0
    %400 = vmatprep.subr.bf16.mxu0 0
    %401 = vmatpush2.bf16.msra.mxu0 0
    %402 = vmatprep.mubr.bf16.mxu0 0
    %403 = vmatmul.mubr.bf16.gmra.mxu0 %v368
    %v404 = vpop.f32.mrf.mxu0
    %v405 = vadd.f32 %v347, %v404
    %v406 = vpop.f32.mrf.mxu0
    %v407 = vpop.f32.mrf.mxu0
    %v408 = vpop.f32.mrf.mxu0
    %409 = vdwg.mxu0
    %v411 = vlaneseq
    %v412 = vshrl.u32 %v411, 7
    %v413 = vsub.s32 0, %v412
    %v414 = vrot.slane %v288, %v413
    %v416 = vadd.f32 %v405, %v414
    %v417 = vxor.u32 %v416, 2147483648
    %v418 = vmul.f32 %v417, 1.442695
    %v419 = vpow.pop %v418
    %v420 = vadd.f32 %v419, 1.0
    %v421 = vrcp.pop %v420
    %v422 = vmul.f32 1.0, %v421
    %v423 = vtanh.pop %v416
    %s424 = scalar_lea.vmem [#allocation11], 8
    %v425 = vld [vmem:[%s424] sm:$0xff]
    %427 = vrot.lane.b32.xlu0 %v425, 32
    %v428 = vpop.permute.xlu0 %427
    %v430 = vmul.f32 %v422, %v428
    %432 = vrot.lane.b32.xlu0 %v423, 64
    %v433 = vpop.permute.xlu0 %432
    %v435 = vmul.f32 %v422, %v433
    %437 = vrot.lane.b32.xlu0 %v435, 32
    %v438 = vpop.permute.xlu0 %437
    %v440 = vadd.f32 %v430, %v438
    %v441 = vtanh.pop %v440
    %443 = vrot.lane.b32.xlu0 %v441, 64
    %v444 = vpop.permute.xlu0 %443
    %v446 = vmul.f32 %v422, %v444
    %v447 = vpack.c.bf16 %v446, %v446
    %v448 = vld [vmem:[#allocation13] sm:$0xf]
    %v449 = vld [vmem:[#allocation13 + $0x4] sm:$0xf]
    %v450 = vld [vmem:[#allocation13 + $0x8] sm:$0xf]
    %v451 = vld [vmem:[#allocation13 + $0xc] sm:$0xf]
    %v452 = vld [vmem:[%s9] sm:$0x1]
    %v454 = vlaneseq
    %v455 = vshrl.u32 %v454, 7
    %v456 = vsub.s32 0, %v455
    %v457 = vrot.slane %v452, %v456
    %460 = vrot.lane.b32.xlu0 %v447, 32
    %v461 = vpop.permute.xlu0 %460
    %v466 = vunpack.c.l.b16 %v448
    %v467 = vunpack.c.l.b16 %v449
    %v468 = vunpack.c.l.b16 %v450
    %v469 = vunpack.c.l.b16 %v451
    %v470 = vpack.c.b16 %v467, %v466
    %v471 = vpack.c.b16 %v469, %v468
    %v475 = vsel %vm153, %v461, 0
    %477 = vmatprep.subr.bf16.mxu0 0
    %478 = vmatpush1.bf16.msra.mxu0 0
    %479 = vmatprep.subr.bf16.mxu0 0
    %480 = vmatpush1.bf16.msra.mxu0 0
    %481 = vmatprep.subr.bf16.mxu0 0
    %482 = vmatpush1.bf16.msra.mxu0 0
    %483 = vmatprep.subr.bf16.mxu0 0
    %484 = vmatpush1.bf16.msra.mxu0 0
    %485 = vmatprep.subr.bf16.mxu0 0
    %486 = vmatpush1.bf16.msra.mxu0 0
    %487 = vmatprep.subr.bf16.mxu0 0
    %488 = vmatpush1.bf16.msra.mxu0 0
    %489 = vmatprep.subr.bf16.mxu0 0
    %490 = vmatpush1.bf16.msra.mxu0 %v471
    %491 = vmatprep.subr.bf16.mxu0 0
    %492 = vmatpush1.bf16.msra.mxu0 %v470
    %493 = vmatprep.subr.bf16.mxu0 0
    %494 = vmatpush2.bf16.msra.mxu0 0
    %495 = vmatprep.subr.bf16.mxu0 0
    %496 = vmatpush2.bf16.msra.mxu0 0
    %497 = vmatprep.subr.bf16.mxu0 0
    %498 = vmatpush2.bf16.msra.mxu0 0
    %499 = vmatprep.subr.bf16.mxu0 0
    %500 = vmatpush2.bf16.msra.mxu0 0
    %501 = vmatprep.subr.bf16.mxu0 0
    %502 = vmatpush2.bf16.msra.mxu0 0
    %503 = vmatprep.subr.bf16.mxu0 0
    %504 = vmatpush2.bf16.msra.mxu0 0
    %505 = vmatprep.subr.bf16.mxu0 0
    %506 = vmatpush2.bf16.msra.mxu0 0
    %507 = vmatprep.subr.bf16.mxu0 0
    %508 = vmatpush2.bf16.msra.mxu0 0
    %509 = vmatprep.mubr.bf16.mxu0 0
    %510 = vmatmul.mubr.bf16.gmra.mxu0 %v475
    %v511 = vpop.f32.mrf.mxu0
    %v512 = vadd.f32 %v457, %v511
    %v513 = vpop.f32.mrf.mxu0
    %v514 = vpop.f32.mrf.mxu0
    %v515 = vpop.f32.mrf.mxu0
    %516 = vdwg.mxu0
    %517 = vst [vmem:[#allocation14] sm:$0xff] %v512
    // Predicated region
    $region70: #{tpu_custom_call.1} parent=1 // pred_check
      _
    $region71: #{tpu_custom_call.1} parent=1 // pred_check_branch
      %519 = sbr.rel (0) target = $region73
    $region72: #{tpu_custom_call.1} parent=1 // pred_region
      %s521 = ssub.s32 128, 128
      %522 = vsyncadd [#allocation4], %s521
      %s524 = sshll.u32 [#allocation14], 4
      %s525 = int_to_ptr.vmem [resolvable:$true] %s524
      %527 = dma.vmem_to_hbm [thread:$0]  %s525, 128, %s10, [#allocation4]
    $region73: #{tpu_custom_call.1} parent=1 // pred_fallthru
      _
    // Predicated region
    $region74: #{tpu_custom_call.1} parent=1 // pred_check
      _
    $region75: #{tpu_custom_call.1} parent=1 // pred_check_branch
      %529 = sbr.rel (0) target = $region77
    $region76: #{tpu_custom_call.1} parent=1 // pred_region
      %530 = dma.done [#allocation4], 128
    $region77: #{tpu_custom_call.1} parent=1 // pred_fallthru
      _
    %531 = vsyncpa [#allocation3], 1
    %532 = vsyncpa [#allocation6], 1
    %533 = vsyncpa [#allocation9], 1
    %534 = vsyncpa [#allocation12], 1
    %535 = vsyncpa [#allocation4], 1

</llo_original>
